<compile_context>
chip_gen: v5e
topology: v5e:2x2
jax: 0.10.0
libtpu: 0.0.40
codegen_flags: <defaults>
</compile_context>

<pallas_src>
import math

import jax
import jax.numpy as jnp
from jax.experimental import pallas as pl
from jax.experimental.pallas import tpu as pltpu

EPS = 1e-07                      # matches self.epsilon in the PyTorch module
LOG_EPS = math.log(EPS)          # lower clamp of the log-prob  (== log(clamp lower))
LOG_1M_EPS = math.log1p(-EPS)    # upper clamp of the log-prob  (== log(clamp upper))


def _ce_kernel(x_ref, y_ref, out_ref, logp_acc):
    """Grid = (B, num_C_tiles). Batch axis is parallel; C axis is a reduction."""
    c = pl.program_id(1)
    nc = pl.num_programs(1)
    blk_c = x_ref.shape[1]

    # reset per-position selected-logprob accumulator at the start of each batch row
    @pl.when(c == 0)
    def _():
        logp_acc[...] = jnp.zeros_like(logp_acc)

    x = x_ref[...].astype(jnp.float32)   # (1, BLK_C, T) — f32 compute (v5e-safe)
    y = y_ref[...]                       # (1, 1, T) int32, -1 == ignore

    # log-softmax over the T axis, per class row (== permute + softmax(dim=1) in ref)
    x_max = jnp.max(x, axis=-1, keepdims=True)                       # (1, BLK_C, 1)
    sum_e = jnp.sum(jnp.exp(x - x_max), axis=-1, keepdims=True)      # (1, BLK_C, 1)
    z = x_max + jnp.log(sum_e)                                       # log over BLK_C only

    # gather the label's log-prob. Offsetting the (1,1,T) label instead of adding
    # c*blk_c to the full (1,BLK_C,T) iota saves one VPU op per element. Classes
    # outside this C tile, padded rows of a partial tile, or ignored positions
    # (y == -1) never match the local iota and contribute exactly 0 via where.
    y_local = y - c * blk_c                                          # (1, 1, T)
    cls = jax.lax.broadcasted_iota(jnp.int32, x.shape, 1)            # local class ids
    onehot = cls == y_local                                          # (1, BLK_C, T) bool
    logp_acc[...] += jnp.sum(jnp.where(onehot, x - z, 0.0), axis=1)  # (1, T)

    @pl.when(c == nc - 1)
    def _():
        # clamp / mask / reduce over only T elements
        logp_sel = jnp.clip(logp_acc[...], LOG_EPS, LOG_1M_EPS)      # (1, T)
        maskf = (y[:, 0, :] != -1).astype(jnp.float32)               # (1, T)
        loss_sum = jnp.sum(-maskf * logp_sel)
        mask_sum = jnp.sum(maskf)
        contrib = loss_sum / mask_sum                                # per-batch loss
        out_ref[...] = jnp.broadcast_to(contrib, out_ref.shape).astype(out_ref.dtype)


def _choose_blk_c(C, T, itemsize, target_block_bytes=8 << 20):
    """Largest C tile whose x block is <= ~8 MiB (16 MiB double-buffered: fits every
    generation incl. v7x's 64 MiB VMEM). Byte-based and dtype-aware, so bf16 inputs
    get 2x larger tiles for free."""
    row_bytes = T * itemsize
    if C * row_bytes <= target_block_bytes:
        return C
    blk = (target_block_bytes // row_bytes) // 8 * 8
    # TODO(synk): if even 8 rows overflow the budget (huge T), add T tiling instead.
    blk = max(8, blk)
    return int(min(blk, C))


def my_cross_entropy_loss(x, y, blk_c=None):
    """x: (B, C, T) float logits (f32 or bf16); y: (B, T) int labels with -1 = ignore."""
    B, C, T = x.shape
    y3 = y.astype(jnp.int32).reshape(B, 1, T)
    itemsize = jnp.dtype(x.dtype).itemsize
    if blk_c is None:
        blk_c = _choose_blk_c(C, T, itemsize)
    n_c = pl.cdiv(C, blk_c)

    # actual VMEM need: double-buffered x + double-buffered y + (1,T) scratch + out,
    # with some headroom; capped at 48 MiB so it is safe on v7x (64 MiB per TC).
    need = 2 * blk_c * T * itemsize + 2 * T * 4 + T * 4 + 2 * 128 * 4
    vmem_limit = int(min(max(need * 5 // 4 + (1 << 20), 16 << 20), 48 << 20))

    out = pl.pallas_call(
        _ce_kernel,
        out_shape=jax.ShapeDtypeStruct((B, 1, 128), jnp.float32),
        grid_spec=pltpu.PrefetchScalarGridSpec(
            num_scalar_prefetch=0,
            grid=(B, n_c),
            in_specs=[
                pl.BlockSpec((1, blk_c, T), lambda b, c: (b, c, 0)),
                pl.BlockSpec((1, 1, T), lambda b, c: (b, 0, 0)),
            ],
            out_specs=pl.BlockSpec((1, 1, 128), lambda b, c: (b, 0, 0)),
            scratch_shapes=[pltpu.VMEM((1, T), jnp.float32)],
        ),
        compiler_params=pltpu.CompilerParams(
            dimension_semantics=("parallel", "arbitrary"),
            vmem_limit_bytes=vmem_limit,
        ),
    )(x, y3)
    # final mean over the batch (per-batch partials reduced in the wrapper)
    return jnp.mean(out[:, 0, 0])


def _ref_loss(x, y):
    """Pure-JAX transcription of the PyTorch forward (label_smooth=0, class_weight=None)."""
    xp = jnp.transpose(x, (0, 2, 1)).astype(jnp.float32)  # (B, T, C)
    mask = (y != -1).astype(jnp.float32)                  # (B, T)
    y_clean = jnp.where(y == -1, 0, y)
    onehot = jax.nn.one_hot(y_clean, xp.shape[2])         # (B, T, C)
    p = jax.nn.softmax(xp, axis=1)                        # softmax over dim=1, as in reference
    p = jnp.clip(p, EPS, 1.0 - EPS)
    loss = -onehot * jnp.log(p)
    per_batch = jnp.sum(mask[:, :, None] * loss, axis=(1, 2)) / jnp.sum(mask, axis=1)
    return jnp.mean(per_batch)


if __name__ == "__main__":
    key = jax.random.PRNGKey(0)

    # case 1: single C tile (default block choice)
    kx, ky, km, key = jax.random.split(key, 4)
    B, C, T = 2, 8, 16
    x = jax.random.normal(kx, (B, C, T), dtype=jnp.float32)
    y = jax.random.randint(ky, (B, T), 0, C, dtype=jnp.int32)
    y = jnp.where(jax.random.bernoulli(km, 0.25, (B, T)), jnp.int32(-1), y)
    out1 = my_cross_entropy_loss(x, y)
    jax.block_until_ready(out1)
    ref1 = _ref_loss(x, y)
    assert jnp.allclose(out1, ref1, atol=1e-5, rtol=1e-5), (float(out1), float(ref1))

    # case 2: force multiple C tiles to exercise the C-axis accumulation path
    kx, ky, km, key = jax.random.split(key, 4)
    B, C, T = 2, 16, 16
    x = jax.random.normal(kx, (B, C, T), dtype=jnp.float32)
    y = jax.random.randint(ky, (B, T), 0, C, dtype=jnp.int32)
    y = jnp.where(jax.random.bernoulli(km, 0.25, (B, T)), jnp.int32(-1), y)
    out2 = my_cross_entropy_loss(x, y, blk_c=8)
    jax.block_until_ready(out2)
    ref2 = _ref_loss(x, y)
    assert jnp.allclose(out2, ref2, atol=1e-5, rtol=1e-5), (float(out2), float(ref2))

    # case 3: bf16 logits (halved HBM traffic); kernel upcasts to f32 internally, so
    # comparing against the reference on the same bf16-quantized logits is tight.
    kx, ky, km, key = jax.random.split(key, 4)
    B, C, T = 2, 8, 16
    xb = jax.random.normal(kx, (B, C, T), dtype=jnp.float32).astype(jnp.bfloat16)
    y = jax.random.randint(ky, (B, T), 0, C, dtype=jnp.int32)
    y = jnp.where(jax.random.bernoulli(km, 0.25, (B, T)), jnp.int32(-1), y)
    out3 = my_cross_entropy_loss(xb, y)
    jax.block_until_ready(out3)
    ref3 = _ref_loss(xb.astype(jnp.float32), y)
    assert jnp.allclose(out3, ref3, atol=1e-5, rtol=1e-5), (float(out3), float(ref3))

    print("KERNEL_OK")
</pallas_src>

<mosaic_0001>
module attributes {stable_mosaic.version = 11 : i64} {
  func.func @_ce_kernel(%arg0: i32, %arg1: i32, %arg2: memref<1x8x16xf32, #tpu.memory_space<vmem>>, %arg3: memref<1x1x16xi32, #tpu.memory_space<vmem>>, %arg4: memref<1x1x128xf32, #tpu.memory_space<vmem>>, %arg5: memref<1x16xf32, #tpu.memory_space<vmem>>) attributes {dimension_semantics = [#tpu.dimension_semantics<parallel>, #tpu.dimension_semantics<arbitrary>], iteration_bounds = array<i64: 2, 1>, scalar_prefetch = 0 : i64, scratch_operands = 1 : i64, tpu.core_type = #tpu.core_type<tc>, window_params = [{transform_indices = @transform_0, window_bounds = array<i64: 1, 8, 16>}, {transform_indices = @transform_1, window_bounds = array<i64: 1, 1, 16>}, {transform_indices = @transform_2, window_bounds = array<i64: 1, 1, 128>}]} {
    %c0_i32 = arith.constant 0 : i32
    %0 = arith.cmpi eq, %arg1, %c0_i32 : i32
    %1 = arith.extui %0 : i1 to i32
    %c0_i32_0 = arith.constant 0 : i32
    %2 = arith.cmpi ne, %1, %c0_i32_0 : i32
    scf.if %2 {
      %cst_15 = arith.constant 0.000000e+00 : f32
      %31 = vector.broadcast %cst_15 : f32 to vector<1x16xf32>
      %c0_16 = arith.constant 0 : index
      %c0_17 = arith.constant 0 : index
      %32 = vector.load %arg5[%c0_16, %c0_17] : memref<1x16xf32, #tpu.memory_space<vmem>>, vector<1x16xf32>
      tpu.vector_store %arg5[%c0_16, %c0_17], %31 {strides = array<i32>} : memref<1x16xf32, #tpu.memory_space<vmem>>, vector<1x16xf32>,
    } else {
    }
    %c0 = arith.constant 0 : index
    %c0_1 = arith.constant 0 : index
    %c0_2 = arith.constant 0 : index
    %3 = vector.load %arg2[%c0, %c0_1, %c0_2] : memref<1x8x16xf32, #tpu.memory_space<vmem>>, vector<1x8x16xf32>
    %c0_3 = arith.constant 0 : index
    %c0_4 = arith.constant 0 : index
    %c0_5 = arith.constant 0 : index
    %4 = vector.load %arg3[%c0_3, %c0_4, %c0_5] : memref<1x1x16xi32, #tpu.memory_space<vmem>>, vector<1x1x16xi32>
    %cst = arith.constant dense<0xFF800000> : vector<1x8xf32>
    %5 = vector.multi_reduction <maximumf>, %3, %cst [2] : vector<1x8x16xf32> to vector<1x8xf32>
    %6 = vector.shape_cast %5 : vector<1x8xf32> to vector<1x8x1xf32>
    %7 = vector.broadcast %6 : vector<1x8x1xf32> to vector<1x8x16xf32>
    %8 = arith.subf %3, %7 : vector<1x8x16xf32>
    %9 = math.exp %8 : vector<1x8x16xf32>
    %cst_6 = arith.constant dense<0.000000e+00> : vector<1x8xf32>
    %10 = vector.multi_reduction <add>, %9, %cst_6 [2] : vector<1x8x16xf32> to vector<1x8xf32>
    %11 = vector.shape_cast %10 : vector<1x8xf32> to vector<1x8x1xf32>
    %12 = math.log %11 : vector<1x8x1xf32>
    %13 = arith.addf %6, %12 : vector<1x8x1xf32>
    %c8_i32 = arith.constant 8 : i32
    %14 = arith.muli %arg1, %c8_i32 : i32
    %15 = vector.broadcast %14 : i32 to vector<1x1x16xi32>
    %16 = arith.subi %4, %15 : vector<1x1x16xi32>
    %17 = tpu.iota {dimensions = array<i32: 1>} : vector<1x8x16xi32>
    %18 = vector.broadcast %16 : vector<1x1x16xi32> to vector<1x8x16xi32>
    %19 = arith.cmpi eq, %17, %18 : vector<1x8x16xi32>
    %c0_7 = arith.constant 0 : index
    %c0_8 = arith.constant 0 : index
    %20 = vector.load %arg5[%c0_7, %c0_8] : memref<1x16xf32, #tpu.memory_space<vmem>>, vector<1x16xf32>
    %21 = vector.broadcast %13 : vector<1x8x1xf32> to vector<1x8x16xf32>
    %22 = arith.subf %3, %21 : vector<1x8x16xf32>
    %cst_9 = arith.constant 0.000000e+00 : f32
    %23 = vector.broadcast %cst_9 : f32 to vector<1x8x16xf32>
    %24 = arith.select %19, %22, %23 : vector<1x8x16xi1>, vector<1x8x16xf32>
    %cst_10 = arith.constant dense<0.000000e+00> : vector<1x16xf32>
    %25 = vector.multi_reduction <add>, %24, %cst_10 [1] : vector<1x8x16xf32> to vector<1x16xf32>
    %26 = arith.addf %20, %25 : vector<1x16xf32>
    %c0_11 = arith.constant 0 : index
    %c0_12 = arith.constant 0 : index
    %27 = vector.load %arg5[%c0_11, %c0_12] : memref<1x16xf32, #tpu.memory_space<vmem>>, vector<1x16xf32>
    tpu.vector_store %arg5[%c0_11, %c0_12], %26 {strides = array<i32>} : memref<1x16xf32, #tpu.memory_space<vmem>>, vector<1x16xf32>,
    %c0_i32_13 = arith.constant 0 : i32
    %28 = arith.cmpi eq, %arg1, %c0_i32_13 : i32
    %29 = arith.extui %28 : i1 to i32
    %c0_i32_14 = arith.constant 0 : i32
    %30 = arith.cmpi ne, %29, %c0_i32_14 : i32
    scf.if %30 {
      %c0_15 = arith.constant 0 : index
      %c0_16 = arith.constant 0 : index
      %31 = vector.load %arg5[%c0_15, %c0_16] : memref<1x16xf32, #tpu.memory_space<vmem>>, vector<1x16xf32>
      %cst_17 = arith.constant -16.1180954 : f32
      %cst_18 = arith.constant -1.00000008E-7 : f32
      %32 = vector.broadcast %cst_17 : f32 to vector<1x16xf32>
      %33 = arith.maximumf %32, %31 : vector<1x16xf32>
      %34 = vector.broadcast %cst_18 : f32 to vector<1x16xf32>
      %35 = arith.minimumf %34, %33 : vector<1x16xf32>
      %36 = vector.shape_cast %4 : vector<1x1x16xi32> to vector<1x16xi32>
      %c-1_i32 = arith.constant -1 : i32
      %37 = vector.broadcast %c-1_i32 : i32 to vector<1x16xi32>
      %38 = arith.cmpi ne, %36, %37 : vector<1x16xi32>
      %39 = arith.extui %38 : vector<1x16xi1> to vector<1x16xi32>
      %40 = arith.sitofp %39 : vector<1x16xi32> to vector<1x16xf32>
      %cst_19 = arith.constant 0.000000e+00 : f32
      %41 = vector.broadcast %cst_19 : f32 to vector<1x16xf32>
      %42 = arith.subf %41, %40 : vector<1x16xf32>
      %43 = arith.mulf %42, %35 : vector<1x16xf32>
      %44 = vector.shape_cast %43 : vector<1x16xf32> to vector<1x1x16xf32>
      %cst_20 = arith.constant dense<0.000000e+00> : vector<1xf32>
      %45 = vector.multi_reduction <add>, %44, %cst_20 [1, 2] : vector<1x1x16xf32> to vector<1xf32>
      %46 = vector.shape_cast %45 : vector<1xf32> to vector<1x1x1xf32>
      %47 = vector.extract %46[0, 0, 0] : f32 from vector<1x1x1xf32>
      %48 = vector.shape_cast %40 : vector<1x16xf32> to vector<1x1x16xf32>
      %cst_21 = arith.constant dense<0.000000e+00> : vector<1xf32>
      %49 = vector.multi_reduction <add>, %48, %cst_21 [1, 2] : vector<1x1x16xf32> to vector<1xf32>
      %50 = vector.shape_cast %49 : vector<1xf32> to vector<1x1x1xf32>
      %51 = vector.extract %50[0, 0, 0] : f32 from vector<1x1x1xf32>
      %52 = arith.divf %47, %51 : f32
      %53 = vector.broadcast %52 : f32 to vector<1x1x128xf32>
      %c0_22 = arith.constant 0 : index
      %c0_23 = arith.constant 0 : index
      %c0_24 = arith.constant 0 : index
      %54 = vector.load %arg4[%c0_22, %c0_23, %c0_24] : memref<1x1x128xf32, #tpu.memory_space<vmem>>, vector<1x1x128xf32>
      tpu.vector_store %arg4[%c0_22, %c0_23, %c0_24], %53 {strides = array<i32>} : memref<1x1x128xf32, #tpu.memory_space<vmem>>, vector<1x1x128xf32>,
    } else {
    }
    return
  }
  func.func @transform_0(%arg0: i32, %arg1: i32) -> (i32, i32, i32) {
    %c0_i32 = arith.constant 0 : i32
    %c0_i32_0 = arith.constant 0 : i32
    return %arg0, %arg1, %c0_i32 : i32, i32, i32
  }
  func.func @transform_1(%arg0: i32, %arg1: i32) -> (i32, i32, i32) {
    %c0_i32 = arith.constant 0 : i32
    %c0_i32_0 = arith.constant 0 : i32
    %c0_i32_1 = arith.constant 0 : i32
    return %arg0, %c0_i32, %c0_i32_0 : i32, i32, i32
  }
  func.func @transform_2(%arg0: i32, %arg1: i32) -> (i32, i32, i32) {
    %c0_i32 = arith.constant 0 : i32
    %c0_i32_0 = arith.constant 0 : i32
    %c0_i32_1 = arith.constant 0 : i32
    return %arg0, %c0_i32, %c0_i32_0 : i32, i32, i32
  }
}

</mosaic_0001>

<llo_original>
// kernel: tpu_custom_call.1
$region0: #{tpu_custom_call.1}
  #allocation0 [shape = 'u32[]', space=smem, size = 0x4, offset = 0x4, fixed_abs, tag = 'smem constant byte address 0x4 - core index']
  #allocation1 [shape = 'u32[72,128]{1,0:T(1,128)}', space=vmem, size = 0x9000, scoped, tag = 'internal scratch']
  #allocation2 [shape = 'f32[1,16]{1,0:T(1,128)}', space=vmem, size = 0x200, scoped, tag = 'scratch operand']
  %s0 = inlined_call_operand.hbm [shape: f32[2,8,16], index: 0, kind: input, shape index: {}]
  %s1 = inlined_call_operand.hbm [shape: s32[2,1,16], index: 1, kind: input, shape index: {}]
  %s2 = inlined_call_operand.hbm [shape: f32[2,1,128], index: 2, kind: output, shape index: {}]
  %s3 = sld [smem:[#allocation0]]
  $region57: #{tpu_custom_call.1} parent=0
    _
  %s5 = ssub.s32 1, %s3
  %s6 = scalar_select 0, %s5, %s3
  $region1: #{tpu_custom_call.1} parent=0
    #allocation3 [shape = 'u8[8192]{0}', space=vmem, size = 0x2000, scoped, tag = 'input window, operand 0']
    #allocation4 [shape = 's32[2]{0}', space=sflag, size = 0x8, scoped, tag = 'scoped memory for tpu_custom_call.1']
    #allocation5 [shape = 's32[2]{0}', space=sflag, size = 0x8, scoped, tag = 'scoped memory for tpu_custom_call.1']
    #allocation6 [shape = 'u8[1024]{0}', space=vmem, size = 0x400, scoped, tag = 'input window, operand 1']
    #allocation7 [shape = 's32[2]{0}', space=sflag, size = 0x8, scoped, tag = 'scoped memory for tpu_custom_call.1']
    #allocation8 [shape = 'u8[1024]{0}', space=vmem, size = 0x400, scoped, tag = 'output window, operand 0']
    %7 = vsyncpa [#allocation4], 0
    %s8 = scalar_lea.sflag [#allocation4], 1
    %9 = vsyncpa %s8, 0
    %10 = vsyncpa [#allocation7], 0
    %s11 = scalar_lea.sflag [#allocation7], 1
    %12 = vsyncpa %s11, 0
    %13 = vsyncpa [#allocation5], 0
    %s14 = scalar_lea.sflag [#allocation5], 1
    %15 = vsyncpa %s14, 0
    loop: start=0, step=1, limit=4
    $region2: #{tpu_custom_call.1} parent=1 // loop_pre_header
      _
    $region3: #{tpu_custom_call.1} parent=1 // loop_header
      %s17 = sphi 0, %s21
      %p18 = scmp.ge.s32.totalorder %s17, 4
      %s24 = sphi 0, %s36
      %s25 = sphi 0, %s32
      %s26 = sphi 0, %s24
      %s27 = sphi 0, %s25
      %s28 = sphi 0, %s26
      %s29 = sphi 0, %s27
      %s41 = sphi 0, %s43
      %s44 = sphi 0, %s41
      %s45 = sphi 0, %s44
      %s61 = sphi 0, %s45
      %s67 = sphi 0, %s69
      %s70 = sphi 0, %s67
      %s71 = sphi 0, %s70
      %s87 = sphi 0, %s71
      %s93 = sphi 0, %s95
      %s96 = sphi 0, %s93
      %s97 = sphi 0, %s96
      %s113 = sphi 0, %s97
    $region4: #{tpu_custom_call.1} parent=1 // loop_header_branch
      %20 = sbr.rel (%p18) target = $region8
    $region5: #{tpu_custom_call.1} parent=1 // loop_body
      %s22 = ssub.s32 %s17, 1
      %s23 = ssub.s32 %s17, 2
      %s30 = sadd.s32 1, %s25
      %p31 = scmp.ge.s32.totalorder %s30, 1
      %s32 = scalar_select %p31, 0, %s30
      %s33 = sadd.s32 1, %s24
      %s34 = scalar_select %p31, %s33, %s24
      %p35 = scmp.ge.s32.totalorder %s34, 2
      %s36 = scalar_select %p35, 0, %s34
      %s37 = ssub.s32 %s24, %s36
      %s38 = ssub.s32 %s25, %s32
      %s39 = sor.u32 %s37, %s38
      %p40 = scmp.eq.s32.totalorder %s39, 0
      %s42 = sadd.s32 %s41, 1
      %s43 = scalar_select %p40, %s41, %s42
      %p46 = pneg %p40
      %p47 = scmp.eq.s32.totalorder %s17, 1
      %p48 = por %p46, %p47
      %p49 = scmp.ne.s32.totalorder %s41, %s44
      %p50 = scmp.eq.s32.totalorder %s17, 0
      %p51 = por %p49, %p50
      %p52 = scmp.ne.s32.totalorder %s41, %s44
      %p53 = scmp.eq.s32.totalorder %s22, 1
      %p54 = por %p52, %p53
      %p55 = scmp.ne.s32.totalorder %s44, %s45
      %p56 = scmp.eq.s32.totalorder %s22, 0
      %p57 = por %p55, %p56
      %p58 = scmp.ne.s32.totalorder %s44, %s45
      %p59 = scmp.eq.s32.totalorder %s23, 1
      %p60 = por %p58, %p59
      %p62 = scmp.ne.s32.totalorder %s45, %s61
      %p63 = scmp.eq.s32.totalorder %s23, 0
      %p64 = por %p62, %p63
      %s65 = ssub.s32 %s24, %s36
      %p66 = scmp.eq.s32.totalorder %s65, 0
      %s68 = sadd.s32 %s67, 1
      %s69 = scalar_select %p66, %s67, %s68
      %p72 = pneg %p66
      %p73 = scmp.eq.s32.totalorder %s17, 1
      %p74 = por %p72, %p73
      %p75 = scmp.ne.s32.totalorder %s67, %s70
      %p76 = scmp.eq.s32.totalorder %s17, 0
      %p77 = por %p75, %p76
      %p78 = scmp.ne.s32.totalorder %s67, %s70
      %p79 = scmp.eq.s32.totalorder %s22, 1
      %p80 = por %p78, %p79
      %p81 = scmp.ne.s32.totalorder %s70, %s71
      %p82 = scmp.eq.s32.totalorder %s22, 0
      %p83 = por %p81, %p82
      %p84 = scmp.ne.s32.totalorder %s70, %s71
      %p85 = scmp.eq.s32.totalorder %s23, 1
      %p86 = por %p84, %p85
      %p88 = scmp.ne.s32.totalorder %s71, %s87
      %p89 = scmp.eq.s32.totalorder %s23, 0
      %p90 = por %p88, %p89
      %s91 = ssub.s32 %s24, %s36
      %p92 = scmp.eq.s32.totalorder %s91, 0
      %s94 = sadd.s32 %s93, 1
      %s95 = scalar_select %p92, %s93, %s94
      %p98 = pneg %p92
      %p99 = scmp.eq.s32.totalorder %s17, 1
      %p100 = por %p98, %p99
      %p101 = scmp.ne.s32.totalorder %s93, %s96
      %p102 = scmp.eq.s32.totalorder %s17, 0
      %p103 = por %p101, %p102
      %p104 = scmp.ne.s32.totalorder %s93, %s96
      %p105 = scmp.eq.s32.totalorder %s22, 1
      %p106 = por %p104, %p105
      %p107 = scmp.ne.s32.totalorder %s96, %s97
      %p108 = scmp.eq.s32.totalorder %s22, 0
      %p109 = por %p107, %p108
      %p110 = scmp.ne.s32.totalorder %s96, %s97
      %p111 = scmp.eq.s32.totalorder %s23, 1
      %p112 = por %p110, %p111
      %p114 = scmp.ne.s32.totalorder %s97, %s113
      %p115 = scmp.eq.s32.totalorder %s23, 0
      %p116 = por %p114, %p115
      %p117 = scmp.le.s32.totalorder 1, %s17
      %p118 = scmp.lt.s32.totalorder %s17, 3
      %p119 = pnand %p117, %p118
      %p120 = pneg %p119
      // Predicated region
      $region9: #{tpu_custom_call.1} parent=5 // pred_check
        _
      $region10: #{tpu_custom_call.1} parent=5 // pred_check_branch
        %122 = sbr.rel (%p119) target = $region12
      $region11: #{tpu_custom_call.1} parent=5 // pred_region
        %s123 = ssub.s32 %s17, 1
      $region12: #{tpu_custom_call.1} parent=5 // pred_fallthru
        _
      %p124 = scmp.lt.s32.totalorder %s17, 2
      // Predicated region
      $region13: #{tpu_custom_call.1} parent=5 // pred_check
        %p125 = pneg %p124
      $region14: #{tpu_custom_call.1} parent=5 // pred_check_branch
        %127 = sbr.rel (%p125) target = $region16
      $region15: #{tpu_custom_call.1} parent=5 // pred_region
        // Predicated region
        $region17: #{tpu_custom_call.1} parent=15 // pred_check
          %p128 = pneg %p51
        $region18: #{tpu_custom_call.1} parent=15 // pred_check_branch
          %130 = sbr.rel (%p128) target = $region20
        $region19: #{tpu_custom_call.1} parent=15 // pred_region
          %s131 = sand.u32 %s41, 1
          %s132 = scalar_lea.sflag [#allocation4], %s131
          %s133 = sand.u32 %s41, 1
          %s134 = smul.addr %s133, 8
          %s135 = scalar_lea.vmem [#allocation3], %s134
          %137 = vsyncadd %s132, 0
          %s138 = sadd.s32 %s25, %s24
          %s139 = smul.addr %s138, 8
          %s140 = scalar_lea.hbm %s0, %s139
          %s142 = sshll.u32 %s140, 4
          %s143 = int_to_ptr.hbm [resolvable:$true] %s142
          %s144 = sshll.u32 %s135, 4
          %s145 = int_to_ptr.vmem [resolvable:$true] %s144
          %147 = dma.hbm_to_vmem [thread:$0]  %s143, 128, %s145, %s132
        $region20: #{tpu_custom_call.1} parent=15 // pred_fallthru
          _
        // Predicated region
        $region21: #{tpu_custom_call.1} parent=15 // pred_check
          %p148 = pneg %p77
        $region22: #{tpu_custom_call.1} parent=15 // pred_check_branch
          %150 = sbr.rel (%p148) target = $region24
        $region23: #{tpu_custom_call.1} parent=15 // pred_region
          %s151 = sand.u32 %s67, 1
          %s152 = scalar_lea.sflag [#allocation7], %s151
          %s153 = sand.u32 %s67, 1
          %s154 = scalar_lea.vmem [#allocation6], %s153
          %156 = vsyncadd %s152, 0
          %s157 = scalar_lea.hbm %s1, %s24
          %s159 = sshll.u32 %s157, 4
          %s160 = int_to_ptr.hbm [resolvable:$true] %s159
          %s161 = sshll.u32 %s154, 4
          %s162 = int_to_ptr.vmem [resolvable:$true] %s161
          %164 = dma.hbm_to_vmem [thread:$0]  %s160, 16, %s162, %s152
        $region24: #{tpu_custom_call.1} parent=15 // pred_fallthru
          _
      $region16: #{tpu_custom_call.1} parent=5 // pred_fallthru
        _
      %p165 = scmp.le.s32.totalorder 1, %s17
      %p166 = scmp.lt.s32.totalorder %s17, 3
      %p167 = pnand %p165, %p166
      %p168 = pneg %p167
      // Predicated region
      $region25: #{tpu_custom_call.1} parent=5 // pred_check
        _
      $region26: #{tpu_custom_call.1} parent=5 // pred_check_branch
        %170 = sbr.rel (%p167) target = $region28
      $region27: #{tpu_custom_call.1} parent=5 // pred_region
        %s171 = ssub.s32 %s17, 1
        %s172 = sand.u32 %s44, 1
        %s173 = scalar_lea.sflag [#allocation4], %s172
        %s174 = sand.u32 %s44, 1
        %s175 = smul.addr %s174, 8
        %s176 = scalar_lea.vmem [#allocation3], %s175
        // Predicated region
        $region29: #{tpu_custom_call.1} parent=27 // pred_check
          %p177 = pneg %p57
        $region30: #{tpu_custom_call.1} parent=27 // pred_check_branch
          %179 = sbr.rel (%p177) target = $region32
        $region31: #{tpu_custom_call.1} parent=27 // pred_region
          %181 = dma.done %s173, 128
        $region32: #{tpu_custom_call.1} parent=27 // pred_fallthru
          _
        %s182 = sand.u32 %s70, 1
        %s183 = scalar_lea.sflag [#allocation7], %s182
        %s184 = sand.u32 %s70, 1
        %s185 = scalar_lea.vmem [#allocation6], %s184
        // Predicated region
        $region33: #{tpu_custom_call.1} parent=27 // pred_check
          %p186 = pneg %p83
        $region34: #{tpu_custom_call.1} parent=27 // pred_check_branch
          %188 = sbr.rel (%p186) target = $region36
        $region35: #{tpu_custom_call.1} parent=27 // pred_region
          %190 = dma.done %s183, 16
        $region36: #{tpu_custom_call.1} parent=27 // pred_fallthru
          _
        %s191 = sand.u32 %s44, 1
        %s192 = scalar_lea.sflag [#allocation4], %s191
        %s193 = sand.u32 %s44, 1
        %s194 = smul.addr %s193, 8
        %s195 = scalar_lea.vmem [#allocation3], %s194
        %p196 = pneg %p57
        %p197 = pneg %p54
        %s198 = sand.u32 %s70, 1
        %s199 = scalar_lea.sflag [#allocation7], %s198
        %s200 = sand.u32 %s70, 1
        %s201 = scalar_lea.vmem [#allocation6], %s200
        %p202 = pneg %p83
        %p203 = pneg %p80
        %p204 = pneg %p109
        %p205 = pneg %p106
        %s206 = sand.u32 %s96, 1
        %s207 = scalar_lea.sflag [#allocation5], %s206
        %s208 = sand.u32 %s96, 1
        %s209 = scalar_lea.vmem [#allocation8], %s208
        %p210 = scmp.eq.s32.totalorder %s27, 0
        // Predicated region
        $region37: #{tpu_custom_call.1} parent=27 // pred_check
          %p211 = pneg %p210
        $region38: #{tpu_custom_call.1} parent=27 // pred_check_branch
          %213 = sbr.rel (%p211) target = $region40
        $region39: #{tpu_custom_call.1} parent=27 // pred_region
          %vm214 = vcmask 122880
          %215 = vst.msk [vmem:[#allocation2] sm:$0x1] %vm214, 0.0
        $region40: #{tpu_custom_call.1} parent=27 // pred_fallthru
          _
        %v216 = vld [vmem:[%s176] sm:$0xff]
        %v217 = vld [vmem:[%s185] sm:$0x1]
        %vm218 = vcmask 130048
        %v219 = vsel %vm218, %v216, -inf
        %220 = vmax.xlane.f32.xlu0 %v219
        %v221 = vpop.xlane.xlu0 %220
        %v222 = vsub.f32 %v216, %v221
        %v223 = vmul.f32 %v222, 1.442695
        %v224 = vpow.pop %v223
        %v225 = vsel %vm218, %v224, 0.0
        %226 = vadd.xlane.f32.xlu0 %v225
        %v227 = vpop.xlane.xlu0 %226
        %v228 = vlog2.pop %v227
        %v229 = vmul.f32 %v228, 0.6931472
        %v230 = vadd.f32 %v221, %v229
        %s231 = smul.u32 %s27, 8
        %v232 = vstv %s231
        %v233 = vsub.s32 %v217, %v232
        %v234 = vlaneseq
        %v235 = vshrl.u32 %v234, 7
        %v236 = vperm.slane %v233, 0
        %vm237 = vcmp.eq.s32.totalorder %v235, %v236
        %v238 = vld [vmem:[#allocation2] sm:$0x1]
        %v239 = vsub.f32 %v216, %v230
        %v240 = vsel %vm237, %v239, 0.0
        %v241 = vsel %vm218, %v240, 0.0
        %v242 = vrot.slane %v241, 4
        %v243 = vadd.f32 %v241, %v242
        %v244 = vrot.slane %v243, 2
        %v245 = vadd.f32 %v243, %v244
        %v246 = vrot.slane %v245, 1
        %v247 = vadd.f32 %v245, %v246
        %v248 = vadd.f32 %v238, %v247
        %vm249 = vcmask 122880
        %250 = vst.msk [vmem:[#allocation2] sm:$0x1] %vm249, %v248
        // Predicated region
        $region41: #{tpu_custom_call.1} parent=27 // pred_check
          %p251 = pneg %p210
        $region42: #{tpu_custom_call.1} parent=27 // pred_check_branch
          %253 = sbr.rel (%p251) target = $region44
        $region43: #{tpu_custom_call.1} parent=27 // pred_region
          %v254 = vld [vmem:[#allocation2] sm:$0x1]
          %v255 = vmax.f32 %v254, -16.118095
          %v256 = vmin.f32 %v255, -1.0000001e-07
          %vm257 = vcmp.ne.s32.totalorder %v217, 4294967295
          %v258 = vsel %vm257, 1, 0
          %v259 = vcvt.s32.f32 %v258
          %v260 = vsub.f32 0.0, %v259
          %v261 = vmul.f32 %v260, %v256
          %v262 = vsel %vm249, %v261, 0.0
          %263 = vadd.xlane.f32.xlu0 %v262
          %v264 = vpop.xlane.xlu0 %263
          %v265 = vrot.slane %v264, 4
          %v266 = vadd.f32 %v264, %v265
          %v267 = vrot.slane %v266, 2
          %v268 = vadd.f32 %v266, %v267
          %v269 = vrot.slane %v268, 1
          %v270 = vadd.f32 %v268, %v269
          %s271 = vtos %v270
          %v272 = vsel %vm249, %v259, 0.0
          %273 = vadd.xlane.f32.xlu0 %v272
          %v274 = vpop.xlane.xlu0 %273
          %v275 = vrot.slane %v274, 4
          %v276 = vadd.f32 %v274, %v275
          %v277 = vrot.slane %v276, 2
          %v278 = vadd.f32 %v276, %v277
          %v279 = vrot.slane %v278, 1
          %v280 = vadd.f32 %v278, %v279
          %s281 = vtos %v280
          %v282 = vstv %s281
          %v283 = vrcp.pop %v282
          %v284 = vmul.f32 %v282, %v283
          %v285 = vsub.f32 1.0, %v284
          %v286 = vmul.f32 %v283, %v285
          %v287 = vadd.f32 %v283, %v286
          %vm288 = vweird.f32 %v282
          %vm289 = vweird.f32 %v283
          %vm290 = vmor %vm288, %vm289
          %v291 = vsel %vm290, %v283, %v287
          %v292 = vand.u32 2147483647, %v282
          %vm293 = vcmp.eq.f32.partialorder %v292, 8.507059e+37
          %v294 = vand.u32 %v282, 2147483648
          %v295 = vor.u32 1.1754944e-38, %v294
          %v296 = vsel %vm293, %v295, %v291
          %s297 = vtos %v296
          %s298 = smul.f32 %s271, %s297
          %v299 = vstv %s298
          %300 = vst [vmem:[%s209] sm:$0x1] %v299
        $region44: #{tpu_custom_call.1} parent=27 // pred_fallthru
          _
        %s301 = sand.u32 %s96, 1
        %s302 = scalar_lea.sflag [#allocation5], %s301
        %s303 = sand.u32 %s96, 1
        %s304 = scalar_lea.vmem [#allocation8], %s303
        // Predicated region
        $region45: #{tpu_custom_call.1} parent=27 // pred_check
          %p305 = pneg %p106
        $region46: #{tpu_custom_call.1} parent=27 // pred_check_branch
          %307 = sbr.rel (%p305) target = $region48
        $region47: #{tpu_custom_call.1} parent=27 // pred_region
          %309 = vsyncadd %s302, 0
          %s310 = scalar_lea.hbm %s2, %s26
          %s312 = sshll.u32 %s304, 4
          %s313 = int_to_ptr.vmem [resolvable:$true] %s312
          %s314 = sshll.u32 %s310, 4
          %s315 = int_to_ptr.hbm [resolvable:$true] %s314
          %317 = dma.vmem_to_hbm [thread:$0]  %s313, 16, %s315, %s302
        $region48: #{tpu_custom_call.1} parent=27 // pred_fallthru
          _
      $region28: #{tpu_custom_call.1} parent=5 // pred_fallthru
        _
      %p318 = scmp.le.s32.totalorder 2, %s17
      // Predicated region
      $region49: #{tpu_custom_call.1} parent=5 // pred_check
        %p319 = pneg %p318
      $region50: #{tpu_custom_call.1} parent=5 // pred_check_branch
        %321 = sbr.rel (%p319) target = $region52
      $region51: #{tpu_custom_call.1} parent=5 // pred_region
        %s322 = ssub.s32 %s17, 2
        // Predicated region
        $region53: #{tpu_custom_call.1} parent=51 // pred_check
          %p323 = pneg %p112
        $region54: #{tpu_custom_call.1} parent=51 // pred_check_branch
          %325 = sbr.rel (%p323) target = $region56
        $region55: #{tpu_custom_call.1} parent=51 // pred_region
          %s326 = sand.u32 %s97, 1
          %s327 = scalar_lea.sflag [#allocation5], %s326
          %s328 = sand.u32 %s97, 1
          %s329 = scalar_lea.vmem [#allocation8], %s328
          %331 = dma.done %s327, 16
        $region56: #{tpu_custom_call.1} parent=51 // pred_fallthru
          _
      $region52: #{tpu_custom_call.1} parent=5 // pred_fallthru
        _
    $region6: #{tpu_custom_call.1} parent=1 // loop_footer
      %s21 = sadd.s32 1, %s17
    $region7: #{tpu_custom_call.1} parent=1 // loop_footer_branch
      %16 = sbr.rel target = $region3
    $region8: #{tpu_custom_call.1} parent=1 // loop_exit
      _
    %332 = vsyncpa [#allocation4], 1
    %s333 = scalar_lea.sflag [#allocation4], 1
    %334 = vsyncpa %s333, 1
    %335 = vsyncpa [#allocation7], 1
    %s336 = scalar_lea.sflag [#allocation7], 1
    %337 = vsyncpa %s336, 1
    %338 = vsyncpa [#allocation5], 1
    %s339 = scalar_lea.sflag [#allocation5], 1
    %340 = vsyncpa %s339, 1

</llo_original>
